<compile_context>
chip_gen: v5e
topology: v5e:2x2
jax: 0.10.0
libtpu: 0.0.40
codegen_flags: <defaults>
</compile_context>

<pallas_src>
import jax
import jax.numpy as jnp
from jax.experimental import pallas as pl
from jax.experimental.pallas import tpu as pltpu


def _identity_kernel(x_ref, o_ref):
    # Pure copy of the current tile (or the whole array on the small path).
    o_ref[...] = x_ref[...]


# Prefer 1024 lanes: lane-dense (8 x 128) while still leaving enough rows for
# multiple grid tiles (megacore) on large inputs.  512 rows is divisible by the
# min sublane counts of f32/bf16/int8 (8/16/32).
_LANE_CANDIDATES = (1024, 2048, 4096, 512, 256, 128)
_BLOCK_ROWS = 512                 # 512 x 1024 f32 = 2 MiB per block
_SMALL_LIMIT_BYTES = 4 << 20      # below this: single whole-array VMEM block


def identity(x: jax.Array) -> jax.Array:
    """Pallas implementation of Identity.forward(x) == x."""
    if x.size == 0:
        return x  # nothing to move

    nbytes = x.size * x.dtype.itemsize

    # ---- Small path: whole array as one VMEM block, no reshape, no grid. ----
    if nbytes <= _SMALL_LIMIT_BYTES:
        return pl.pallas_call(
            _identity_kernel,
            out_shape=jax.ShapeDtypeStruct(x.shape, x.dtype),
            input_output_aliases={0: 0},
        )(x)

    # ---- Large path: lane-dense 2-D tiling, big blocks, no padding. ---------
    n = x.size
    lane = next((w for w in _LANE_CANDIDATES if n % w == 0), None)
    if lane is None:
        # Total size not a multiple of 128: a pure identity should not pay a
        # pad + slice HBM round-trip, so pass the array through untouched.
        return x

    rows = n // lane
    block_rows = min(rows, _BLOCK_ROWS)   # == rows (full dim) when rows < 512
    x2d = x.reshape(rows, lane)           # contiguous reshape: no data movement

    out2d = pl.pallas_call(
        _identity_kernel,
        out_shape=jax.ShapeDtypeStruct((rows, lane), x.dtype),
        grid=(pl.cdiv(rows, block_rows),),            # ragged last tile masked
        in_specs=[pl.BlockSpec((block_rows, lane), lambda i: (i, 0))],
        out_specs=pl.BlockSpec((block_rows, lane), lambda i: (i, 0)),
        input_output_aliases={0: 0},
        compiler_params=pltpu.CompilerParams(
            dimension_semantics=("parallel",),
        ),
    )(x2d)
    return out2d.reshape(x.shape)         # contiguous reshape: no data movement


if __name__ == "__main__":
    key = jax.random.PRNGKey(0)

    # Small NCHW input consistent with typical conv-net usage of Identity.
    x = jax.random.normal(key, (2, 4, 16, 16), dtype=jnp.float32)
    y = jax.block_until_ready(identity(x))
    assert y.shape == x.shape
    assert y.dtype == x.dtype
    assert bool(jnp.all(y == x))

    # Also exercise the tiled (large-input) path, including a ragged last tile.
    x_big = jax.random.normal(key, (2500, 1024), dtype=jnp.float32)  # ~9.8 MiB
    y_big = jax.block_until_ready(identity(x_big))
    assert y_big.shape == x_big.shape
    assert y_big.dtype == x_big.dtype
    assert bool(jnp.all(y_big == x_big))

    print("KERNEL_OK")
</pallas_src>

<mosaic_0001>
module attributes {stable_mosaic.version = 11 : i64} {
  func.func @_identity_kernel(%arg0: memref<2x4x16x16xf32, #tpu.memory_space<vmem>>, %arg1: memref<2x4x16x16xf32, #tpu.memory_space<vmem>>) attributes {dimension_semantics = [], scalar_prefetch = 0 : i64, scratch_operands = 0 : i64, tpu.core_type = #tpu.core_type<tc>} {
    %c0 = arith.constant 0 : index
    %c0_0 = arith.constant 0 : index
    %c0_1 = arith.constant 0 : index
    %c0_2 = arith.constant 0 : index
    %0 = vector.load %arg0[%c0, %c0_0, %c0_1, %c0_2] : memref<2x4x16x16xf32, #tpu.memory_space<vmem>>, vector<2x4x16x16xf32>
    %c0_3 = arith.constant 0 : index
    %c0_4 = arith.constant 0 : index
    %c0_5 = arith.constant 0 : index
    %c0_6 = arith.constant 0 : index
    %1 = vector.load %arg1[%c0_3, %c0_4, %c0_5, %c0_6] : memref<2x4x16x16xf32, #tpu.memory_space<vmem>>, vector<2x4x16x16xf32>
    tpu.vector_store %arg1[%c0_3, %c0_4, %c0_5, %c0_6], %0 {strides = array<i32>} : memref<2x4x16x16xf32, #tpu.memory_space<vmem>>, vector<2x4x16x16xf32>,
    return
  }
}

</mosaic_0001>

<llo_original>
// kernel: tpu_custom_call.1
$region0: #{tpu_custom_call.1}
  #allocation0 [shape = 'u32[]', space=smem, size = 0x4, offset = 0x4, fixed_abs, tag = 'smem constant byte address 0x4 - core index']
  #allocation1 [shape = 'u32[72,128]{1,0:T(1,128)}', space=vmem, size = 0x9000, scoped, tag = 'internal scratch']
  %s0 = inlined_call_operand.hbm [shape: f32[2,4,16,16], index: 0, kind: input, shape index: {}, may-alias: {0,1}]
  %s1 = inlined_call_operand.hbm [shape: f32[2,4,16,16], index: 1, kind: output, shape index: {}, may-alias: {0,1}]
  %s2 = sld [smem:[#allocation0]]
  $region18: #{tpu_custom_call.1} parent=0
    _
  %s4 = ssub.s32 1, %s2
  %s5 = scalar_select 0, %s4, %s2
  $region1: #{tpu_custom_call.1} parent=0
    #allocation2 [shape = 'u8[65536]{0}', space=vmem, size = 0x10000, scoped, tag = 'input window, operand 0, single buffered']
    #allocation3 [shape = 's32[1]{0}', space=sflag, size = 0x4, scoped, tag = 'scoped memory for tpu_custom_call.1']
    #allocation4 [shape = 's32[1]{0}', space=sflag, size = 0x4, scoped, tag = 'scoped memory for tpu_custom_call.1']
    #allocation5 [shape = 'u8[65536]{0}', space=vmem, size = 0x10000, scoped, tag = 'output window, operand 0, single buffered']
    %6 = vsyncpa [#allocation3], 0
    %7 = vsyncpa [#allocation4], 0
    // Predicated region
    $region2: #{tpu_custom_call.1} parent=1 // pred_check
      _
    $region3: #{tpu_custom_call.1} parent=1 // pred_check_branch
      %9 = sbr.rel (0) target = $region5
    $region4: #{tpu_custom_call.1} parent=1 // pred_region
      %11 = vsyncadd [#allocation3], 0
      %s12 = sshll.u32 %s0, 4
      %s13 = int_to_ptr.hbm [resolvable:$true] %s12
      %s14 = sshll.u32 [#allocation2], 4
      %s15 = int_to_ptr.vmem [resolvable:$true] %s14
      %20 = dma.hbm_to_vmem [thread:$0]  %s13, 2048, %s15, [#allocation3], 128, 128, 8
    $region5: #{tpu_custom_call.1} parent=1 // pred_fallthru
      _
    // Predicated region
    $region6: #{tpu_custom_call.1} parent=1 // pred_check
      _
    $region7: #{tpu_custom_call.1} parent=1 // pred_check_branch
      %22 = sbr.rel (0) target = $region9
    $region8: #{tpu_custom_call.1} parent=1 // pred_region
      %24 = dma.done [#allocation3], 2048
    $region9: #{tpu_custom_call.1} parent=1 // pred_fallthru
      _
    %v25 = vld [vmem:[#allocation2] sm:$0xff]
    %v26 = vld [vmem:[#allocation2 + $0x8] sm:$0xff]
    %v27 = vld [vmem:[#allocation2 + $0x10] sm:$0xff]
    %v28 = vld [vmem:[#allocation2 + $0x18] sm:$0xff]
    %v29 = vld [vmem:[#allocation2 + $0x20] sm:$0xff]
    %v30 = vld [vmem:[#allocation2 + $0x28] sm:$0xff]
    %v31 = vld [vmem:[#allocation2 + $0x30] sm:$0xff]
    %v32 = vld [vmem:[#allocation2 + $0x38] sm:$0xff]
    %v33 = vld [vmem:[#allocation2 + $0x40] sm:$0xff]
    %v34 = vld [vmem:[#allocation2 + $0x48] sm:$0xff]
    %v35 = vld [vmem:[#allocation2 + $0x50] sm:$0xff]
    %v36 = vld [vmem:[#allocation2 + $0x58] sm:$0xff]
    %v37 = vld [vmem:[#allocation2 + $0x60] sm:$0xff]
    %v38 = vld [vmem:[#allocation2 + $0x68] sm:$0xff]
    %v39 = vld [vmem:[#allocation2 + $0x70] sm:$0xff]
    %v40 = vld [vmem:[#allocation2 + $0x78] sm:$0xff]
    %vm41 = vcmask 130048
    %42 = vst.msk [vmem:[#allocation5] sm:$0xff] %vm41, %v25
    %43 = vst.msk [vmem:[#allocation5 + $0x8] sm:$0xff] %vm41, %v26
    %44 = vst.msk [vmem:[#allocation5 + $0x10] sm:$0xff] %vm41, %v27
    %45 = vst.msk [vmem:[#allocation5 + $0x18] sm:$0xff] %vm41, %v28
    %46 = vst.msk [vmem:[#allocation5 + $0x20] sm:$0xff] %vm41, %v29
    %47 = vst.msk [vmem:[#allocation5 + $0x28] sm:$0xff] %vm41, %v30
    %48 = vst.msk [vmem:[#allocation5 + $0x30] sm:$0xff] %vm41, %v31
    %49 = vst.msk [vmem:[#allocation5 + $0x38] sm:$0xff] %vm41, %v32
    %50 = vst.msk [vmem:[#allocation5 + $0x40] sm:$0xff] %vm41, %v33
    %51 = vst.msk [vmem:[#allocation5 + $0x48] sm:$0xff] %vm41, %v34
    %52 = vst.msk [vmem:[#allocation5 + $0x50] sm:$0xff] %vm41, %v35
    %53 = vst.msk [vmem:[#allocation5 + $0x58] sm:$0xff] %vm41, %v36
    %54 = vst.msk [vmem:[#allocation5 + $0x60] sm:$0xff] %vm41, %v37
    %55 = vst.msk [vmem:[#allocation5 + $0x68] sm:$0xff] %vm41, %v38
    %56 = vst.msk [vmem:[#allocation5 + $0x70] sm:$0xff] %vm41, %v39
    %57 = vst.msk [vmem:[#allocation5 + $0x78] sm:$0xff] %vm41, %v40
    // Predicated region
    $region10: #{tpu_custom_call.1} parent=1 // pred_check
      _
    $region11: #{tpu_custom_call.1} parent=1 // pred_check_branch
      %59 = sbr.rel (0) target = $region13
    $region12: #{tpu_custom_call.1} parent=1 // pred_region
      %61 = vsyncadd [#allocation4], 0
      %s62 = sshll.u32 [#allocation5], 4
      %s63 = int_to_ptr.vmem [resolvable:$true] %s62
      %s64 = sshll.u32 %s1, 4
      %s65 = int_to_ptr.hbm [resolvable:$true] %s64
      %70 = dma.vmem_to_hbm [thread:$0]  %s63, 2048, %s65, [#allocation4], 128, 128, 8
    $region13: #{tpu_custom_call.1} parent=1 // pred_fallthru
      _
    // Predicated region
    $region14: #{tpu_custom_call.1} parent=1 // pred_check
      _
    $region15: #{tpu_custom_call.1} parent=1 // pred_check_branch
      %72 = sbr.rel (0) target = $region17
    $region16: #{tpu_custom_call.1} parent=1 // pred_region
      %74 = dma.done [#allocation4], 2048
    $region17: #{tpu_custom_call.1} parent=1 // pred_fallthru
      _
    %75 = vsyncpa [#allocation3], 1
    %76 = vsyncpa [#allocation4], 1

</llo_original>
